<compile_context>
chip_gen: v6e
topology: v6e:2x2x1
jax: 0.10.0
libtpu: 0.0.40
codegen_flags: <defaults>
</compile_context>

<pallas_src>
import functools

import jax
import jax.numpy as jnp
from jax.experimental import pallas as pl
from jax.experimental.pallas import tpu as pltpu


# ----------------------------------------------------------------------------
# Kernels
# ----------------------------------------------------------------------------
def _dma_identity_kernel(x_hbm_ref, o_hbm_ref):
    """Copy the whole input to the output with one HBM->HBM DMA.

    No grid, no VMEM round-trip, no vld/vst work on the TensorCore: the DMA
    engine does the streaming, so the copy is purely HBM-bandwidth-bound on
    every generation (v5e/v6e/v7x).
    """
    def body(sem):
        cp = pltpu.make_async_copy(x_hbm_ref, o_hbm_ref, sem)
        cp.start()
        cp.wait()

    pl.run_scoped(body, pltpu.SemaphoreType.DMA(()))


def _alias_identity_kernel(x_hbm_ref, o_hbm_ref):
    # Output buffer IS the input buffer (input_output_aliases={0: 0});
    # the payload is already in place, nothing to do.
    del x_hbm_ref, o_hbm_ref


# ----------------------------------------------------------------------------
# Wrappers
# ----------------------------------------------------------------------------
def identity_materialize(x):
    """Return a freshly materialized copy of x via a single HBM->HBM DMA."""
    return pl.pallas_call(
        _dma_identity_kernel,
        out_shape=jax.ShapeDtypeStruct(x.shape, x.dtype),
        in_specs=[pl.BlockSpec(memory_space=pl.ANY)],
        out_specs=pl.BlockSpec(memory_space=pl.ANY),
    )(x)


@functools.partial(jax.jit, donate_argnums=(0,))
def _identity_aliased_jit(x):
    # Donation is what makes this O(1): without it XLA inserts a hidden
    # full-size copy in front of the pallas_call to preserve the caller's
    # buffer, silently turning the "no-op" back into an O(size) HBM copy.
    return pl.pallas_call(
        _alias_identity_kernel,
        out_shape=jax.ShapeDtypeStruct(x.shape, x.dtype),
        in_specs=[pl.BlockSpec(memory_space=pl.ANY)],
        out_specs=pl.BlockSpec(memory_space=pl.ANY),
        input_output_aliases={0: 0},
    )(x)


def identity_aliased(x):
    """O(1) trace-visible identity.

    CONTRACT: x's buffer is DONATED (consumed); do not reuse x after this call.
    """
    return _identity_aliased_jit(x)


def ac_multilevel_forward(x, *, materialize=False):
    """Forward pass of AC_Multilevel: identity.

    materialize=False (default): returns x itself — fastest possible identity,
        no kernel dispatch at all.
    materialize=True: returns a fresh buffer with the same contents, produced
        by one HBM->HBM DMA inside a Pallas kernel (works for any shape/size).
    """
    if not materialize:
        return x
    return identity_materialize(x)


# ----------------------------------------------------------------------------
# Self-test
# ----------------------------------------------------------------------------
if __name__ == "__main__":
    key = jax.random.PRNGKey(0)

    # Small NCHW input consistent with the module: batch=2, C=4, H=W=16.
    x_small = jax.random.normal(key, (2, 4, 16, 16), dtype=jnp.float32)

    # 1) Default identity path (no kernel launch; strictly fastest).
    y_small = ac_multilevel_forward(x_small)
    jax.block_until_ready(y_small)
    assert y_small.shape == x_small.shape and y_small.dtype == x_small.dtype
    assert bool(jnp.all(y_small == x_small))

    # 2) Materializing path: single HBM->HBM DMA kernel, works for tiny inputs
    #    too and always returns a fresh buffer.
    y_mat_small = ac_multilevel_forward(x_small, materialize=True)
    jax.block_until_ready(y_mat_small)
    assert y_mat_small.shape == x_small.shape and y_mat_small.dtype == x_small.dtype
    assert bool(jnp.all(y_mat_small == x_small))

    # Slightly larger input (2, 8, 64, 64) = 256 KiB f32 to exercise the DMA
    # with a non-trivial payload.
    x_big = jax.random.normal(key, (2, 8, 64, 64), dtype=jnp.float32)
    y_mat_big = ac_multilevel_forward(x_big, materialize=True)
    jax.block_until_ready(y_mat_big)
    assert y_mat_big.shape == x_big.shape and y_mat_big.dtype == x_big.dtype
    assert bool(jnp.all(y_mat_big == x_big))

    # 3) Aliased O(1) path: pass a throwaway buffer because its storage is
    #    donated (it becomes the output buffer).
    x_donate = x_big + 0.0            # fresh buffer we are allowed to give up
    y_alias = identity_aliased(x_donate)
    jax.block_until_ready(y_alias)
    assert y_alias.shape == x_big.shape and y_alias.dtype == x_big.dtype
    assert bool(jnp.all(y_alias == x_big))

    print("KERNEL_OK")
</pallas_src>

<mosaic_0001>
module attributes {stable_mosaic.version = 11 : i64} {
  func.func @_dma_identity_kernel(%arg0: memref<2x4x16x16xf32, #tpu.memory_space<any>>, %arg1: memref<2x4x16x16xf32, #tpu.memory_space<any>>) attributes {dimension_semantics = [], scalar_prefetch = 0 : i64, scratch_operands = 0 : i64, tpu.core_type = #tpu.core_type<tc>} {
    "tpu.region"() ({
      %0 = tpu.sem_alloc : memref<!tpu.dma_semaphore, #tpu.memory_space<semaphore_mem>>
      tpu.enqueue_dma source(%arg0 : memref<2x4x16x16xf32, #tpu.memory_space<any>>) target(%arg1 : memref<2x4x16x16xf32, #tpu.memory_space<any>>) target_semaphore(%0 : memref<!tpu.dma_semaphore, #tpu.memory_space<semaphore_mem>>)
      tpu.wait_dma2 semaphore(%0 : memref<!tpu.dma_semaphore, #tpu.memory_space<semaphore_mem>>) src(%arg0 : memref<2x4x16x16xf32, #tpu.memory_space<any>>) dst(%arg1 : memref<2x4x16x16xf32, #tpu.memory_space<any>>)
      tpu.yield
    }) : () -> ()
    return
  }
}

</mosaic_0001>

<llo_original>
// kernel: tpu_custom_call.1
$region0: #{tpu_custom_call.1}
  #allocation0 [shape = 'u32[]', space=smem, size = 0x4, offset = 0x4, fixed_abs, tag = 'smem constant byte address 0x4 - core index']
  #allocation1 [shape = 'u32[144,128]{1,0:T(1,128)}', space=vmem, size = 0x12000, scoped, tag = 'internal scratch']
  #allocation3 [shape = 's32[]', space=sflag, size = 0x4, offset = 0, fixed_abs, tag = 'sflag constant byte address 0x0 - dummy sync flag']
  #allocation4 [shape = 'u32[0]{0}', space=smem, size = 0, offset = 0, fixed_abs, tag = 'smem constant byte address 0x0 - null']
  %s0 = inlined_call_operand.hbm [shape: f32[2,4,16,16], index: 0, kind: input, shape index: {}]
  %s1 = inlined_call_operand.hbm [shape: f32[2,4,16,16], index: 1, kind: output, shape index: {}]
  %s2 = sld [smem:[#allocation0]]
  $region3: #{tpu_custom_call.1} parent=0
    _
  %s4 = ssub.s32 1, %s2
  %s5 = scalar_select 0, %s4, %s2
  $region2: #{tpu_custom_call.1} parent=0
    #allocation2 [shape = 's32[1]{0}', space=sflag, size = 0x4, scoped, tag = 'scoped memory for tpu_custom_call.1']
    %s7 = sshll.u32 1, 14
    %s8 = sxor.u32 4294967295, %s7
    %12 = dma.general %s0, 2048, %s1, [#allocation2], 131072, [#allocation4], 0, 0
    %s13 = smul.u32 2, 4
    %s14 = smul.u32 %s13, 16
    %s15 = smul.u32 %s14, 1
    %s16 = sshll.u32 %s15, 4
    %17 = dma.done [#allocation2], %s16

</llo_original>
